<compile_context>
chip_gen: v7x
topology: tpu7x:2x2x1
jax: 0.10.0
libtpu: 0.0.40
codegen_flags: <defaults>
</compile_context>

<pallas_src>
import jax
import jax.numpy as jnp
from jax.experimental import pallas as pl
from jax.experimental.pallas import tpu as pltpu


# ---------------------------------------------------------------------------
# Tile selection
# ---------------------------------------------------------------------------
_TM_MAX = 256          # output rows per tile (sublane axis, multiple of 8)
_TN_MAX = 256          # output cols per tile (lane axis, multiple of 128)
_TK_MAX = 1024         # contraction tile when C is large (multiple of 128)
_G_MAX = 8             # max batches fused per grid step
# Double-buffered working-set budget: stays under the smallest scoped-VMEM
# default of any chip (v5e: 16 MiB), so this compiles everywhere without
# raising vmem_limit_bytes.  On v6e (128 MiB physical) larger _TK_MAX plus an
# explicit vmem_limit_bytes is a further win; on v7x (64 MiB physical) keep
# this conservative.
_VMEM_BUDGET = 12 * 1024 * 1024


def _round_up(x, m):
    return (x + m - 1) // m * m


def _pick_tiles(B, C, M, N, p_bytes, q_bytes, out_bytes):
    # M: second-to-last dim of pT-blocks and out-blocks -> multiple of 8.
    m8 = _round_up(M, 8)
    if m8 <= _TM_MAX:
        tm, Mp = m8, m8
    else:
        tm, Mp = _TM_MAX, _round_up(M, _TM_MAX)

    # N: lane (last) dim of q-blocks and out-blocks -> multiple of 128 so the
    # output store is lane-dense.
    n128 = _round_up(N, 128)
    if n128 <= _TN_MAX:
        tn, Np = n128, n128
    else:
        tn, Np = _TN_MAX, _round_up(N, _TN_MAX)

    # C: contraction dim.  Keep it un-tiled (single K step, no padding) when it
    # fits; otherwise tile with a 128-multiple and zero-pad.
    if C <= _TK_MAX:
        tk, Cp = C, C
    else:
        tk, Cp = _TK_MAX, _round_up(C, _TK_MAX)

    # Per-batch working set: double-buffered inputs + output, single-buffered
    # f32 accumulator.
    per_g = (2 * tm * tk * p_bytes
             + 2 * tk * tn * q_bytes
             + 2 * tm * tn * out_bytes
             + tm * tn * 4)

    # Fuse as many batches per step as divide B and fit the budget (amortises
    # per-grid-step overhead when each matmul is small).
    G = 1
    for cand in range(2, min(B, _G_MAX) + 1):
        if B % cand == 0 and cand * per_g <= _VMEM_BUDGET:
            G = cand
    return G, tm, tn, tk, Mp, Np, Cp


# ---------------------------------------------------------------------------
# Kernel
# ---------------------------------------------------------------------------
def _bmm_kernel(pT_ref, q_ref, o_ref, acc_ref):
    # pT_ref: (G, tm, tk), q_ref: (G, tk, tn), o_ref: (G, tm, tn)
    k = pl.program_id(3)

    @pl.when(k == 0)
    def _init():
        acc_ref[...] = jnp.zeros_like(acc_ref)

    # Batched (over the fused-batch axis G) matmul on the MXU.  Operands stay
    # in their input dtype; accumulate in f32.
    acc_ref[...] += jnp.einsum(
        "gmk,gkn->gmn", pT_ref[...], q_ref[...],
        preferred_element_type=jnp.float32)

    @pl.when(k == pl.num_programs(3) - 1)
    def _store():
        o_ref[...] = acc_ref[...].astype(o_ref.dtype)


# ---------------------------------------------------------------------------
# Wrapper
# ---------------------------------------------------------------------------
@jax.jit
def cosine_similarity_matrix(p, q):
    """sim_matrix = p.transpose(-2, -1) @ q  for p:(B,C,M), q:(B,C,N) -> (B,M,N)."""
    B, C, M = p.shape
    Bq, Cq, N = q.shape
    assert B == Bq and C == Cq, "batch / channel dims of p and q must match"
    out_dtype = jnp.result_type(p.dtype, q.dtype)

    G, tm, tn, tk, Mp, Np, Cp = _pick_tiles(
        B, C, M, N,
        p.dtype.itemsize, q.dtype.itemsize, jnp.dtype(out_dtype).itemsize)

    # Wrapper-side layout plumbing (cheap XLA ops):
    #  * pre-transpose p -> (B, M, C) so the kernel is a plain row-major dot,
    #  * zero-pad so every block satisfies the (8,128) tiling rule and the
    #    output tile is lane-dense.  Zero padding along C contributes nothing
    #    to the contraction; padded M/N rows/cols are sliced off afterwards.
    pT = jnp.swapaxes(p, -1, -2)
    pT = jnp.pad(pT, ((0, 0), (0, Mp - M), (0, Cp - C)))
    qp = jnp.pad(q, ((0, 0), (0, Cp - C), (0, Np - N)))

    grid = (B // G, Mp // tm, Np // tn, Cp // tk)

    out = pl.pallas_call(
        _bmm_kernel,
        out_shape=jax.ShapeDtypeStruct((B, Mp, Np), out_dtype),
        grid_spec=pltpu.PrefetchScalarGridSpec(
            num_scalar_prefetch=0,
            grid=grid,
            in_specs=[
                pl.BlockSpec((G, tm, tk), lambda b, i, j, k: (b, i, k)),
                pl.BlockSpec((G, tk, tn), lambda b, i, j, k: (b, k, j)),
            ],
            out_specs=pl.BlockSpec((G, tm, tn), lambda b, i, j, k: (b, i, j)),
            scratch_shapes=[pltpu.VMEM((G, tm, tn), jnp.float32)],
        ),
        compiler_params=pltpu.CompilerParams(
            # Contraction axis last and "arbitrary" (accumulator pattern);
            # batch / M / N tile axes are independent -> "parallel".
            dimension_semantics=("parallel", "parallel", "parallel", "arbitrary"),
        ),
    )(pT, qp)

    return out[:, :M, :N]


# ---------------------------------------------------------------------------
# Self-test
# ---------------------------------------------------------------------------
if __name__ == "__main__":
    key = jax.random.PRNGKey(0)
    k1, k2, k3, k4 = jax.random.split(key, 4)

    # Small shapes consistent with the module's forward: p:(B,C,M), q:(B,C,N).
    B, C, M, N = 2, 32, 16, 16
    p = jax.random.normal(k1, (B, C, M), dtype=jnp.float32)
    q = jax.random.normal(k2, (B, C, N), dtype=jnp.float32)
    out = jax.block_until_ready(cosine_similarity_matrix(p, q))
    ref = jnp.einsum("bcm,bcn->bmn", p, q,
                     precision=jax.lax.Precision.HIGHEST)
    assert out.shape == (B, M, N)
    assert jnp.allclose(out, ref, atol=1e-4, rtol=1e-4)

    # Second, unaligned shape: exercises M/N/C padding, lane-dense output tile
    # and batch fusion (G=3).
    B2, C2, M2, N2 = 3, 200, 100, 160
    p2 = jax.random.normal(k3, (B2, C2, M2), dtype=jnp.float32)
    q2 = jax.random.normal(k4, (B2, C2, N2), dtype=jnp.float32)
    out2 = jax.block_until_ready(cosine_similarity_matrix(p2, q2))
    ref2 = jnp.einsum("bcm,bcn->bmn", p2, q2,
                      precision=jax.lax.Precision.HIGHEST)
    assert out2.shape == (B2, M2, N2)
    assert jnp.allclose(out2, ref2, atol=1e-3, rtol=1e-3)

    print("KERNEL_OK")
</pallas_src>

<mosaic_0001>
module attributes {stable_mosaic.version = 11 : i64} {
  func.func @_bmm_kernel(%arg0: i32, %arg1: i32, %arg2: i32, %arg3: i32, %arg4: memref<2x16x32xf32, #tpu.memory_space<vmem>>, %arg5: memref<2x32x128xf32, #tpu.memory_space<vmem>>, %arg6: memref<2x16x128xf32, #tpu.memory_space<vmem>>, %arg7: memref<2x16x128xf32, #tpu.memory_space<vmem>>) attributes {dimension_semantics = [#tpu.dimension_semantics<parallel>, #tpu.dimension_semantics<parallel>, #tpu.dimension_semantics<parallel>, #tpu.dimension_semantics<arbitrary>], iteration_bounds = array<i64: 1, 1, 1, 1>, scalar_prefetch = 0 : i64, scratch_operands = 1 : i64, tpu.core_type = #tpu.core_type<tc>, window_params = [{transform_indices = @transform_0, window_bounds = array<i64: 2, 16, 32>}, {transform_indices = @transform_1, window_bounds = array<i64: 2, 32, 128>}, {transform_indices = @transform_2, window_bounds = array<i64: 2, 16, 128>}]} {
    %c0_i32 = arith.constant 0 : i32
    %0 = arith.cmpi eq, %arg3, %c0_i32 : i32
    %1 = arith.extui %0 : i1 to i32
    %c0_i32_0 = arith.constant 0 : i32
    %2 = arith.cmpi ne, %1, %c0_i32_0 : i32
    scf.if %2 {
      %cst_14 = arith.constant 0.000000e+00 : f32
      %12 = vector.broadcast %cst_14 : f32 to vector<2x16x128xf32>
      %c0_15 = arith.constant 0 : index
      %c0_16 = arith.constant 0 : index
      %c0_17 = arith.constant 0 : index
      %13 = vector.load %arg7[%c0_15, %c0_16, %c0_17] : memref<2x16x128xf32, #tpu.memory_space<vmem>>, vector<2x16x128xf32>
      tpu.vector_store %arg7[%c0_15, %c0_16, %c0_17], %12 {strides = array<i32>} : memref<2x16x128xf32, #tpu.memory_space<vmem>>, vector<2x16x128xf32>,
    } else {
    }
    %c0 = arith.constant 0 : index
    %c0_1 = arith.constant 0 : index
    %c0_2 = arith.constant 0 : index
    %3 = vector.load %arg7[%c0, %c0_1, %c0_2] : memref<2x16x128xf32, #tpu.memory_space<vmem>>, vector<2x16x128xf32>
    %c0_3 = arith.constant 0 : index
    %c0_4 = arith.constant 0 : index
    %c0_5 = arith.constant 0 : index
    %4 = vector.load %arg4[%c0_3, %c0_4, %c0_5] : memref<2x16x32xf32, #tpu.memory_space<vmem>>, vector<2x16x32xf32>
    %c0_6 = arith.constant 0 : index
    %c0_7 = arith.constant 0 : index
    %c0_8 = arith.constant 0 : index
    %5 = vector.load %arg5[%c0_6, %c0_7, %c0_8] : memref<2x32x128xf32, #tpu.memory_space<vmem>>, vector<2x32x128xf32>
    "tpu.trace_start"() <{level = 10 : i32, message = "gmk,gkn->gmn"}> : () -> ()
    %cst = arith.constant dense<0.000000e+00> : vector<2x16x128xf32>
    %6 = tpu.matmul %4, %5, %cst {dimension_numbers = #tpu.dot_dimension_numbers<[2], [1], [1], [2], [0, 0, 0, 1, 1, 2], [0], [0]>} : vector<2x16x32xf32>, vector<2x32x128xf32>, vector<2x16x128xf32> -> vector<2x16x128xf32>
    "tpu.trace_stop"() : () -> ()
    %7 = arith.addf %3, %6 : vector<2x16x128xf32>
    %c0_9 = arith.constant 0 : index
    %c0_10 = arith.constant 0 : index
    %c0_11 = arith.constant 0 : index
    %8 = vector.load %arg7[%c0_9, %c0_10, %c0_11] : memref<2x16x128xf32, #tpu.memory_space<vmem>>, vector<2x16x128xf32>
    tpu.vector_store %arg7[%c0_9, %c0_10, %c0_11], %7 {strides = array<i32>} : memref<2x16x128xf32, #tpu.memory_space<vmem>>, vector<2x16x128xf32>,
    %c0_i32_12 = arith.constant 0 : i32
    %9 = arith.cmpi eq, %arg3, %c0_i32_12 : i32
    %10 = arith.extui %9 : i1 to i32
    %c0_i32_13 = arith.constant 0 : i32
    %11 = arith.cmpi ne, %10, %c0_i32_13 : i32
    scf.if %11 {
      %c0_14 = arith.constant 0 : index
      %c0_15 = arith.constant 0 : index
      %c0_16 = arith.constant 0 : index
      %12 = vector.load %arg7[%c0_14, %c0_15, %c0_16] : memref<2x16x128xf32, #tpu.memory_space<vmem>>, vector<2x16x128xf32>
      %c0_17 = arith.constant 0 : index
      %c0_18 = arith.constant 0 : index
      %c0_19 = arith.constant 0 : index
      %13 = vector.load %arg6[%c0_17, %c0_18, %c0_19] : memref<2x16x128xf32, #tpu.memory_space<vmem>>, vector<2x16x128xf32>
      tpu.vector_store %arg6[%c0_17, %c0_18, %c0_19], %12 {strides = array<i32>} : memref<2x16x128xf32, #tpu.memory_space<vmem>>, vector<2x16x128xf32>,
    } else {
    }
    return
  }
  func.func @transform_0(%arg0: i32, %arg1: i32, %arg2: i32, %arg3: i32) -> (i32, i32, i32) {
    %c0_i32 = arith.constant 0 : i32
    return %arg0, %arg1, %arg3 : i32, i32, i32
  }
  func.func @transform_1(%arg0: i32, %arg1: i32, %arg2: i32, %arg3: i32) -> (i32, i32, i32) {
    %c0_i32 = arith.constant 0 : i32
    return %arg0, %arg3, %arg2 : i32, i32, i32
  }
  func.func @transform_2(%arg0: i32, %arg1: i32, %arg2: i32, %arg3: i32) -> (i32, i32, i32) {
    %c0_i32 = arith.constant 0 : i32
    return %arg0, %arg1, %arg2 : i32, i32, i32
  }
}

</mosaic_0001>

<llo_original>
// kernel: cosine_similarity_matrix.1
$region0: #{cosine_similarity_matrix.1}
  #allocation0 [shape = 'u32[]', space=smem, size = 0x4, offset = 0x4, fixed_abs, tag = 'smem constant byte address 0x4 - core index']
  #allocation1 [shape = 'u32[144,128]{1,0:T(1,128)}', space=vmem, size = 0x12000, scoped, tag = 'internal scratch']
  #allocation2 [shape = 'f32[2,16,128]{2,1,0:T(8,128)}', space=vmem, size = 0x4000, scoped, tag = 'scratch operand']
  %s0 = inlined_call_operand.vmem [shape: f32[2,16,32], index: 0, kind: input, shape index: {}]
  %s1 = inlined_call_operand.vmem [shape: f32[2,32,128], index: 1, kind: input, shape index: {}]
  %s2 = inlined_call_operand.hbm [shape: f32[2,16,128], index: 2, kind: output, shape index: {}]
  %s3 = sld [smem:[#allocation0]]
  $region26: #{cosine_similarity_matrix.1} parent=0
    _
  %s5 = ssub.s32 1, %s3
  %s6 = scalar_select 0, %s5, %s3
  $region1: #{cosine_similarity_matrix.1} parent=0
    #allocation3 [shape = 'u8[16384]{0}', space=vmem, size = 0x4000, scoped, tag = 'output window, operand 0, single buffered']
    #allocation4 [shape = 's32[1]{0}', space=sflag, size = 0x4, scoped, tag = 'scoped memory for cosine_similarity_matrix.1']
    %7 = vsyncpa [#allocation4], 0
    // Predicated region
    $region2: #{cosine_similarity_matrix.1} parent=1 // pred_check
      _
    $region3: #{cosine_similarity_matrix.1} parent=1 // pred_check_branch
      %9 = sbr.rel (0) target = $region5
    $region4: #{cosine_similarity_matrix.1} parent=1 // pred_region
      _
    $region5: #{cosine_similarity_matrix.1} parent=1 // pred_fallthru
      _
    // Predicated region
    $region6: #{cosine_similarity_matrix.1} parent=1 // pred_check
      _
    $region7: #{cosine_similarity_matrix.1} parent=1 // pred_check_branch
      %11 = sbr.rel (0) target = $region9
    $region8: #{cosine_similarity_matrix.1} parent=1 // pred_region
      _
    $region9: #{cosine_similarity_matrix.1} parent=1 // pred_fallthru
      _
    %p12 = scmp.eq.s32.totalorder 0, 0
    // Predicated region
    $region10: #{cosine_similarity_matrix.1} parent=1 // pred_check
      %p13 = pneg %p12
    $region11: #{cosine_similarity_matrix.1} parent=1 // pred_check_branch
      %15 = sbr.rel (%p13) target = $region13
    $region12: #{cosine_similarity_matrix.1} parent=1 // pred_region
      %16 = vst [vmem:[#allocation2] sm:$0xff] 0.0
      %17 = vst [vmem:[#allocation2 + $0x8] sm:$0xff] 0.0
      %18 = vst [vmem:[#allocation2 + $0x10] sm:$0xff] 0.0
      %19 = vst [vmem:[#allocation2 + $0x18] sm:$0xff] 0.0
    $region13: #{cosine_similarity_matrix.1} parent=1 // pred_fallthru
      _
    %v20 = vld [vmem:[#allocation2] sm:$0xff]
    %v21 = vld [vmem:[#allocation2 + $0x8] sm:$0xff]
    %v22 = vld [vmem:[#allocation2 + $0x10] sm:$0xff]
    %v23 = vld [vmem:[#allocation2 + $0x18] sm:$0xff]
    %v24 = vld [vmem:[%s0] sm:$0xff]
    %v25 = vld [vmem:[%s0 + $0x8] sm:$0xff]
    %v26 = vld [vmem:[%s0 + $0x10] sm:$0xff]
    %v27 = vld [vmem:[%s0 + $0x18] sm:$0xff]
    %v28 = vld [vmem:[%s1] sm:$0xff]
    %v29 = vld [vmem:[%s1 + $0x8] sm:$0xff]
    %v30 = vld [vmem:[%s1 + $0x10] sm:$0xff]
    %v31 = vld [vmem:[%s1 + $0x18] sm:$0xff]
    %v32 = vld [vmem:[%s1 + $0x20] sm:$0xff]
    %v33 = vld [vmem:[%s1 + $0x28] sm:$0xff]
    %v34 = vld [vmem:[%s1 + $0x30] sm:$0xff]
    %v35 = vld [vmem:[%s1 + $0x38] sm:$0xff]
    %vm36 = vcmask 261120
    %v38 = vsel %vm36, %v24, 0
    %v41 = vsel %vm36, %v25, 0
    %43 = vmatprep.subr.mxu0 0.0
    %44 = vmatpush1.msra.mxu0 %v28
    %45 = vmatprep.subr.mxu0 0.0
    %46 = vmatpush1.msra.mxu0 %v29
    %47 = vmatprep.subr.mxu0 0.0
    %48 = vmatpush1.msra.mxu0 %v30
    %49 = vmatprep.subr.mxu0 0.0
    %50 = vmatpush1.msra.mxu0 %v31
    %51 = vmatprep.subr.mxu0 0.0
    %52 = vmatpush1.msra.mxu0 0.0
    %53 = vmatprep.subr.mxu0 0.0
    %54 = vmatpush1.msra.mxu0 0.0
    %55 = vmatprep.subr.mxu0 0.0
    %56 = vmatpush1.msra.mxu0 0.0
    %57 = vmatprep.subr.mxu0 0.0
    %58 = vmatpush1.msra.mxu0 0.0
    %59 = vmatprep.subr.mxu0 0.0
    %60 = vmatpush1.msra.mxu0 0.0
    %61 = vmatprep.subr.mxu0 0.0
    %62 = vmatpush1.msra.mxu0 0.0
    %63 = vmatprep.subr.mxu0 0.0
    %64 = vmatpush1.msra.mxu0 0.0
    %65 = vmatprep.subr.mxu0 0.0
    %66 = vmatpush1.msra.mxu0 0.0
    %67 = vmatprep.subr.mxu0 0.0
    %68 = vmatpush1.msra.mxu0 0.0
    %69 = vmatprep.subr.mxu0 0.0
    %70 = vmatpush1.msra.mxu0 0.0
    %71 = vmatprep.subr.mxu0 0.0
    %72 = vmatpush1.msra.mxu0 0.0
    %73 = vmatprep.subr.mxu0 0.0
    %74 = vmatpush1.msra.mxu0 0.0
    %75 = vmatprep.subr.mxu0 0.0
    %76 = vmatpush1.msra.mxu0 0.0
    %77 = vmatprep.subr.mxu0 0.0
    %78 = vmatpush1.msra.mxu0 0.0
    %79 = vmatprep.subr.mxu0 0.0
    %80 = vmatpush1.msra.mxu0 0.0
    %81 = vmatprep.subr.mxu0 0.0
    %82 = vmatpush1.msra.mxu0 0.0
    %83 = vmatprep.subr.mxu0 0.0
    %84 = vmatpush1.msra.mxu0 0.0
    %85 = vmatprep.subr.mxu0 0.0
    %86 = vmatpush1.msra.mxu0 0.0
    %87 = vmatprep.subr.mxu0 0.0
    %88 = vmatpush1.msra.mxu0 0.0
    %89 = vmatprep.subr.mxu0 0.0
    %90 = vmatpush1.msra.mxu0 0.0
    %91 = vmatprep.subr.mxu0 0.0
    %92 = vmatpush1.msra.mxu0 0.0
    %93 = vmatprep.subr.mxu0 0.0
    %94 = vmatpush1.msra.mxu0 0.0
    %95 = vmatprep.subr.mxu0 0.0
    %96 = vmatpush1.msra.mxu0 0.0
    %97 = vmatprep.subr.mxu0 0.0
    %98 = vmatpush1.msra.mxu0 0.0
    %99 = vmatprep.subr.mxu0 0.0
    %100 = vmatpush1.msra.mxu0 0.0
    %101 = vmatprep.subr.mxu0 0.0
    %102 = vmatpush1.msra.mxu0 0.0
    %103 = vmatprep.subr.mxu0 0.0
    %104 = vmatpush1.msra.mxu0 0.0
    %105 = vmatprep.subr.mxu0 0.0
    %106 = vmatpush1.msra.mxu0 0.0
    %107 = vmatprep.mubr.f32.mxu0 0.0
    %108 = vmatmul.mubr.f32.gmra.mrb[0].mxu0 %v38
    %v109 = vpop.f32.mrb[0].mxu0
    %v110 = vadd.f32 0.0, %v109
    %v111 = vpop.f32.mrb[0].mxu0
    %112 = vmatprep.mubr.f32.mxu0 0.0
    %113 = vmatmul.mubr.f32.gmra.mrb[0].mxu0 %v41
    %v114 = vpop.f32.mrb[0].mxu0
    %v115 = vadd.f32 0.0, %v114
    %v116 = vpop.f32.mrb[0].mxu0
    %117 = vdwg.mxu0
    %v119 = vsel %vm36, %v26, 0
    %v122 = vsel %vm36, %v27, 0
    %124 = vmatprep.subr.mxu0 0.0
    %125 = vmatpush1.msra.mxu0 %v32
    %126 = vmatprep.subr.mxu0 0.0
    %127 = vmatpush1.msra.mxu0 %v33
    %128 = vmatprep.subr.mxu0 0.0
    %129 = vmatpush1.msra.mxu0 %v34
    %130 = vmatprep.subr.mxu0 0.0
    %131 = vmatpush1.msra.mxu0 %v35
    %132 = vmatprep.subr.mxu0 0.0
    %133 = vmatpush1.msra.mxu0 0.0
    %134 = vmatprep.subr.mxu0 0.0
    %135 = vmatpush1.msra.mxu0 0.0
    %136 = vmatprep.subr.mxu0 0.0
    %137 = vmatpush1.msra.mxu0 0.0
    %138 = vmatprep.subr.mxu0 0.0
    %139 = vmatpush1.msra.mxu0 0.0
    %140 = vmatprep.subr.mxu0 0.0
    %141 = vmatpush1.msra.mxu0 0.0
    %142 = vmatprep.subr.mxu0 0.0
    %143 = vmatpush1.msra.mxu0 0.0
    %144 = vmatprep.subr.mxu0 0.0
    %145 = vmatpush1.msra.mxu0 0.0
    %146 = vmatprep.subr.mxu0 0.0
    %147 = vmatpush1.msra.mxu0 0.0
    %148 = vmatprep.subr.mxu0 0.0
    %149 = vmatpush1.msra.mxu0 0.0
    %150 = vmatprep.subr.mxu0 0.0
    %151 = vmatpush1.msra.mxu0 0.0
    %152 = vmatprep.subr.mxu0 0.0
    %153 = vmatpush1.msra.mxu0 0.0
    %154 = vmatprep.subr.mxu0 0.0
    %155 = vmatpush1.msra.mxu0 0.0
    %156 = vmatprep.subr.mxu0 0.0
    %157 = vmatpush1.msra.mxu0 0.0
    %158 = vmatprep.subr.mxu0 0.0
    %159 = vmatpush1.msra.mxu0 0.0
    %160 = vmatprep.subr.mxu0 0.0
    %161 = vmatpush1.msra.mxu0 0.0
    %162 = vmatprep.subr.mxu0 0.0
    %163 = vmatpush1.msra.mxu0 0.0
    %164 = vmatprep.subr.mxu0 0.0
    %165 = vmatpush1.msra.mxu0 0.0
    %166 = vmatprep.subr.mxu0 0.0
    %167 = vmatpush1.msra.mxu0 0.0
    %168 = vmatprep.subr.mxu0 0.0
    %169 = vmatpush1.msra.mxu0 0.0
    %170 = vmatprep.subr.mxu0 0.0
    %171 = vmatpush1.msra.mxu0 0.0
    %172 = vmatprep.subr.mxu0 0.0
    %173 = vmatpush1.msra.mxu0 0.0
    %174 = vmatprep.subr.mxu0 0.0
    %175 = vmatpush1.msra.mxu0 0.0
    %176 = vmatprep.subr.mxu0 0.0
    %177 = vmatpush1.msra.mxu0 0.0
    %178 = vmatprep.subr.mxu0 0.0
    %179 = vmatpush1.msra.mxu0 0.0
    %180 = vmatprep.subr.mxu0 0.0
    %181 = vmatpush1.msra.mxu0 0.0
    %182 = vmatprep.subr.mxu0 0.0
    %183 = vmatpush1.msra.mxu0 0.0
    %184 = vmatprep.subr.mxu0 0.0
    %185 = vmatpush1.msra.mxu0 0.0
    %186 = vmatprep.subr.mxu0 0.0
    %187 = vmatpush1.msra.mxu0 0.0
    %188 = vmatprep.mubr.f32.mxu0 0.0
    %189 = vmatmul.mubr.f32.gmra.mrb[0].mxu0 %v119
    %v190 = vpop.f32.mrb[0].mxu0
    %v191 = vadd.f32 0.0, %v190
    %v192 = vpop.f32.mrb[0].mxu0
    %193 = vmatprep.mubr.f32.mxu0 0.0
    %194 = vmatmul.mubr.f32.gmra.mrb[0].mxu0 %v122
    %v195 = vpop.f32.mrb[0].mxu0
    %v196 = vadd.f32 0.0, %v195
    %v197 = vpop.f32.mrb[0].mxu0
    %198 = vdwg.mxu0
    %v199 = vadd.f32 %v20, %v110
    %v200 = vadd.f32 %v21, %v115
    %v201 = vadd.f32 %v22, %v191
    %v202 = vadd.f32 %v23, %v196
    %203 = vst [vmem:[#allocation2] sm:$0xff] %v199
    %204 = vst [vmem:[#allocation2 + $0x8] sm:$0xff] %v200
    %205 = vst [vmem:[#allocation2 + $0x10] sm:$0xff] %v201
    %206 = vst [vmem:[#allocation2 + $0x18] sm:$0xff] %v202
    // Predicated region
    $region14: #{cosine_similarity_matrix.1} parent=1 // pred_check
      %p207 = pneg %p12
    $region15: #{cosine_similarity_matrix.1} parent=1 // pred_check_branch
      %209 = sbr.rel (%p207) target = $region17
    $region16: #{cosine_similarity_matrix.1} parent=1 // pred_region
      %v210 = vld [vmem:[#allocation2] sm:$0xff]
      %v211 = vld [vmem:[#allocation2 + $0x8] sm:$0xff]
      %v212 = vld [vmem:[#allocation2 + $0x10] sm:$0xff]
      %v213 = vld [vmem:[#allocation2 + $0x18] sm:$0xff]
      %214 = vst [vmem:[#allocation3] sm:$0xff] %v210
      %215 = vst [vmem:[#allocation3 + $0x8] sm:$0xff] %v211
      %216 = vst [vmem:[#allocation3 + $0x10] sm:$0xff] %v212
      %217 = vst [vmem:[#allocation3 + $0x18] sm:$0xff] %v213
    $region17: #{cosine_similarity_matrix.1} parent=1 // pred_fallthru
      _
    // Predicated region
    $region18: #{cosine_similarity_matrix.1} parent=1 // pred_check
      _
    $region19: #{cosine_similarity_matrix.1} parent=1 // pred_check_branch
      %219 = sbr.rel (0) target = $region21
    $region20: #{cosine_similarity_matrix.1} parent=1 // pred_region
      %s221 = ssub.s32 512, 512
      %222 = vsyncadd [#allocation4], %s221
      %s223 = sshll.u32 [#allocation3], 4
      %s224 = int_to_ptr.vmem [resolvable:$true] %s223
      %229 = dma.vmem_to_hbm [thread:$0]  %s224, 512, %s2, [#allocation4], 128, 128, 8
    $region21: #{cosine_similarity_matrix.1} parent=1 // pred_fallthru
      _
    // Predicated region
    $region22: #{cosine_similarity_matrix.1} parent=1 // pred_check
      _
    $region23: #{cosine_similarity_matrix.1} parent=1 // pred_check_branch
      %231 = sbr.rel (0) target = $region25
    $region24: #{cosine_similarity_matrix.1} parent=1 // pred_region
      %232 = dma.done [#allocation4], 512
    $region25: #{cosine_similarity_matrix.1} parent=1 // pred_fallthru
      _
    %233 = vsyncpa [#allocation4], 1

</llo_original>
